<compile_context>
chip_gen: v6e
topology: v6e:2x2x1
jax: 0.10.0
libtpu: 0.0.40
codegen_flags: <defaults>
</compile_context>

<pallas_src>
import functools

import jax
import jax.numpy as jnp
from jax import lax
from jax.experimental import pallas as pl
from jax.experimental.pallas import tpu as pltpu

EPS = 1e-8
_MAX_ROW_TILE = 2048
_DEFAULT_COL_TILE = 512
_DEFAULT_DENSE_THRESHOLD = 512


def _round_up(x: int, m: int) -> int:
    return ((x + m - 1) // m) * m


def _vmem_limit_bytes() -> int:
    """Generation-aware scoped-VMEM limit with headroom for compiler scratch."""
    try:
        cap = int(pltpu.get_tpu_info().vmem_capacity_bytes)
    except Exception:
        cap = 64 * 1024 * 1024  # conservative fallback (v7x per-core size)
    # v7x (64 MiB physical) -> 48 MiB; v5e/v6e (128 MiB physical) -> 96 MiB.
    return min(cap * 3 // 4, 100 * 1024 * 1024)


def _pick_row_tile(n_rows: int, bytes_per_row: int, fixed_bytes: int,
                   vmem_limit: int) -> int:
    """Largest 8-aligned row tile fitting ~half the VMEM limit, with >=2 grid steps."""
    budget = max(vmem_limit // 2 - fixed_bytes, 8 * bytes_per_row)
    tile = min(budget // max(bytes_per_row, 1), _MAX_ROW_TILE)
    if n_rows >= 16:
        # At least two row tiles: shards work across both v7x TensorCores and gives
        # the double-buffered pipeline something to overlap.
        tile = min(tile, (n_rows + 1) // 2)
    tile = min(tile, n_rows)
    return _round_up(max(int(tile), 1), 8)


def _make_w(n: int) -> jax.Array:
    """(N, N-1) trapezoid-cumsum weights: (|x| @ W)[:, i] == cumtrapz(|x|, dx=1)[:, i]."""
    nm1 = n - 1
    k = jnp.arange(n, dtype=jnp.int32)[:, None]      # contraction index
    i = jnp.arange(nm1, dtype=jnp.int32)[None, :]    # output index
    w = jnp.where(k <= i, 1.0, 0.0)
    w = jnp.where((k == 0) | (k == i + 1), 0.5, w)
    return w.astype(jnp.float32)


def _make_prefix(tk: int) -> jax.Array:
    """(tk, tk) inclusive prefix-sum matrix: (t @ L)[:, i] == cumsum(t, axis=1)[:, i]."""
    k = jnp.arange(tk, dtype=jnp.int32)[:, None]
    i = jnp.arange(tk, dtype=jnp.int32)[None, :]
    return (k <= i).astype(jnp.float32)


def _trapz_total(pdf):
    # Exact trapezoid row-sum (the CDF normalizer), computed directly from |x| with a
    # cross-lane reduce so it does not depend on the matmul's last column.
    return jnp.sum(pdf, axis=1, keepdims=True) - 0.5 * (pdf[:, :1] + pdf[:, -1:])


# ----------------------------- dense (small/medium N) -----------------------------

def _cdf_dense_kernel(data_ref, w_ref, out_ref, *, eps):
    pdf = jnp.abs(data_ref[...].astype(jnp.float32))
    v = jnp.dot(pdf, w_ref[...], preferred_element_type=jnp.float32)   # cumtrapz via MXU
    inv = pl.reciprocal(eps + _trapz_total(pdf), approx=False)         # exact (tolerance)
    out_ref[...] = v * inv


def _w1_dense_kernel(data_ref, refcdf_ref, w_ref, out_ref, *, eps, n):
    pdf = jnp.abs(data_ref[...].astype(jnp.float32))
    v = jnp.dot(pdf, w_ref[...], preferred_element_type=jnp.float32)
    inv = pl.reciprocal(eps + _trapz_total(pdf), approx=False)
    diff = v * inv - refcdf_ref[...]
    out_ref[...] = jnp.sum(diff * diff, axis=1, keepdims=True) * (1.0 / (n - 1))


def _pallas_cdf_dense(rows, w, *, eps, tile, vmem_limit):
    r, n = rows.shape
    nm1 = n - 1
    return pl.pallas_call(
        functools.partial(_cdf_dense_kernel, eps=eps),
        out_shape=jax.ShapeDtypeStruct((r, nm1), jnp.float32),
        grid=(pl.cdiv(r, tile),),
        in_specs=[
            pl.BlockSpec((tile, n), lambda i: (i, 0)),
            pl.BlockSpec((n, nm1), lambda i: (0, 0), pipeline_mode=pl.Buffered(1)),
        ],
        out_specs=pl.BlockSpec((tile, nm1), lambda i: (i, 0)),
        compiler_params=pltpu.CompilerParams(
            dimension_semantics=("parallel",), vmem_limit_bytes=vmem_limit),
        cost_estimate=pl.CostEstimate(
            flops=2 * r * n * nm1 + 4 * r * n,
            transcendentals=0,
            bytes_accessed=rows.size * rows.dtype.itemsize + 4 * (n * nm1 + r * nm1)),
    )(rows, w)


def _pallas_w1_dense(rows, refcdf, w, *, eps, tile, vmem_limit):
    r, n = rows.shape
    nm1 = n - 1
    return pl.pallas_call(
        functools.partial(_w1_dense_kernel, eps=eps, n=n),
        out_shape=jax.ShapeDtypeStruct((r, 1), jnp.float32),
        grid=(pl.cdiv(r, tile),),
        in_specs=[
            pl.BlockSpec((tile, n), lambda i: (i, 0)),
            pl.BlockSpec((tile, nm1), lambda i: (i, 0)),
            pl.BlockSpec((n, nm1), lambda i: (0, 0), pipeline_mode=pl.Buffered(1)),
        ],
        out_specs=pl.BlockSpec((tile, 1), lambda i: (i, 0)),
        compiler_params=pltpu.CompilerParams(
            dimension_semantics=("parallel",), vmem_limit_bytes=vmem_limit),
        cost_estimate=pl.CostEstimate(
            flops=2 * r * n * nm1 + 7 * r * nm1,
            transcendentals=0,
            bytes_accessed=rows.size * rows.dtype.itemsize + 4 * (r * nm1 + n * nm1 + r)),
    )(rows, refcdf, w)


# ------------------------------ blocked (large N) ---------------------------------

def _denom_kernel(data_ref, out_ref, acc_ref, *, n, tk):
    c = pl.program_id(1)

    @pl.when(c == 0)
    def _():
        acc_ref[...] = jnp.zeros_like(acc_ref)

    pdf = jnp.abs(data_ref[...].astype(jnp.float32))
    gcol = lax.broadcasted_iota(jnp.int32, pdf.shape, 1) + c * tk
    w = jnp.where((gcol == 0) | (gcol == n - 1), 0.5, 1.0)
    contrib = jnp.where(gcol < n, pdf * w, 0.0)               # mask ragged tail cols
    acc_ref[...] += jnp.sum(contrib, axis=1, keepdims=True)

    @pl.when(c == pl.num_programs(1) - 1)
    def _():
        out_ref[...] = acc_ref[...]


def _w1_blocked_kernel(data_ref, refpad_ref, denom_ref, l_ref, out_ref,
                       carry_ref, prev_ref, acc_ref, *, eps, n, tk):
    c = pl.program_id(1)

    @pl.when(c == 0)
    def _():
        carry_ref[...] = jnp.zeros_like(carry_ref)
        prev_ref[...] = jnp.zeros_like(prev_ref)
        acc_ref[...] = jnp.zeros_like(acc_ref)

    pdf = jnp.abs(data_ref[...].astype(jnp.float32))           # (tile, tk)
    col = lax.broadcasted_iota(jnp.int32, pdf.shape, 1)
    gcol = col + c * tk
    valid = gcol < n

    shifted = pltpu.roll(pdf, shift=1, axis=1)                 # XLU lane rotate
    prev = jnp.where(col == 0, prev_ref[...], shifted)         # pdf at (global col - 1)
    t = jnp.where(valid & (gcol > 0), 0.5 * (prev + pdf), 0.0)  # trapezoid increments

    # Running inclusive cumsum: carry + intra-chunk prefix sum via triangular matmul.
    v = carry_ref[...] + jnp.dot(t, l_ref[...], preferred_element_type=jnp.float32)
    inv = pl.reciprocal(eps + denom_ref[...], approx=False)
    diff = jnp.where(valid, v * inv - refpad_ref[...].astype(jnp.float32), 0.0)
    acc_ref[...] += jnp.sum(diff * diff, axis=1, keepdims=True)

    carry_ref[...] = v[:, -1:]
    prev_ref[...] = pdf[:, -1:]

    @pl.when(c == pl.num_programs(1) - 1)
    def _():
        out_ref[...] = acc_ref[...] * (1.0 / (n - 1))


def _pallas_denominators(rows, *, tile, tk, n, vmem_limit):
    r = rows.shape[0]
    return pl.pallas_call(
        functools.partial(_denom_kernel, n=n, tk=tk),
        out_shape=jax.ShapeDtypeStruct((r, 1), jnp.float32),
        grid=(pl.cdiv(r, tile), pl.cdiv(n, tk)),
        in_specs=[pl.BlockSpec((tile, tk), lambda i, c: (i, c))],
        out_specs=pl.BlockSpec((tile, 1), lambda i, c: (i, 0)),
        scratch_shapes=[pltpu.VMEM((tile, 1), jnp.float32)],
        compiler_params=pltpu.CompilerParams(
            dimension_semantics=("parallel", "arbitrary"), vmem_limit_bytes=vmem_limit),
        cost_estimate=pl.CostEstimate(
            flops=3 * r * n, transcendentals=0,
            bytes_accessed=rows.size * rows.dtype.itemsize + 4 * r),
    )(rows)


def _pallas_w1_blocked(rows, refpad, denom, prefix, *, eps, tile, tk, vmem_limit):
    r, n = rows.shape
    return pl.pallas_call(
        functools.partial(_w1_blocked_kernel, eps=eps, n=n, tk=tk),
        out_shape=jax.ShapeDtypeStruct((r, 1), jnp.float32),
        grid=(pl.cdiv(r, tile), pl.cdiv(n, tk)),
        in_specs=[
            pl.BlockSpec((tile, tk), lambda i, c: (i, c)),
            pl.BlockSpec((tile, tk), lambda i, c: (i, c)),
            pl.BlockSpec((tile, 1), lambda i, c: (i, 0)),
            pl.BlockSpec((tk, tk), lambda i, c: (0, 0), pipeline_mode=pl.Buffered(1)),
        ],
        out_specs=pl.BlockSpec((tile, 1), lambda i, c: (i, 0)),
        scratch_shapes=[pltpu.VMEM((tile, 1), jnp.float32)] * 3,
        compiler_params=pltpu.CompilerParams(
            dimension_semantics=("parallel", "arbitrary"), vmem_limit_bytes=vmem_limit),
        cost_estimate=pl.CostEstimate(
            flops=2 * r * n * tk + 10 * r * n,
            transcendentals=0,
            bytes_accessed=rows.size * rows.dtype.itemsize
                           + 4 * (r * n + tk * tk + 2 * r)),
    )(rows, refpad, denom, prefix)


# ------------------------------------ module --------------------------------------

class EasyW1Loss:
    """JAX/Pallas port of the PyTorch EasyW1Loss (renorm=abs, dim=-1)."""

    def __init__(self, ref_data: jax.Array, eps: float = EPS, *,
                 dense_threshold: int = _DEFAULT_DENSE_THRESHOLD,
                 col_tile: int = _DEFAULT_COL_TILE):
        B, C, N = ref_data.shape
        assert N >= 2
        self.eps = float(eps)
        self._shape = (B, C, N)
        self._rows = B * C
        self._vmem_limit = _vmem_limit_bytes()
        self._use_dense = N <= dense_threshold

        ref_rows = ref_data.reshape(self._rows, N)   # no pad, no astype (cast in-kernel)

        if self._use_dense:
            # Dense path: cumulative trapezoid folded into one (N, N-1) MXU matmul.
            self._w = _make_w(N)
            itemsize = max(ref_data.dtype.itemsize, 4)
            bytes_per_row = 2 * N * itemsize + 2 * (N - 1) * 4 + 2 * 512
            fixed = N * (N - 1) * 4                   # W, single-buffered
            self._tile = _pick_row_tile(self._rows, bytes_per_row, fixed, self._vmem_limit)
            cdf_rows = _pallas_cdf_dense(ref_rows, self._w, eps=self.eps,
                                         tile=self._tile, vmem_limit=self._vmem_limit)
            self._cdf_rows = cdf_rows
        else:
            # Blocked path (large N): O(N*tk) FLOPs, no (N, N-1) weight matrix in VMEM.
            self._tk = _round_up(min(col_tile, N), 128)
            self._prefix = _make_prefix(self._tk)
            bytes_per_row = 4 * self._tk * 4 + 8 * 512
            fixed = self._tk * self._tk * 4           # L, single-buffered
            self._tile = _pick_row_tile(self._rows, bytes_per_row, fixed, self._vmem_limit)
            # Init-time reference CDF is a one-time cost -> plain JAX cumulative trapezoid.
            pdf = jnp.abs(ref_rows.astype(jnp.float32))
            v = jnp.cumsum(0.5 * (pdf[:, :-1] + pdf[:, 1:]), axis=1)
            cdf_rows = v / (self.eps + v[:, -1:])
            self._cdf_rows = cdf_rows
            # Leading zero column so ref-CDF chunks align with the running-cumsum chunks.
            self._refpad = jnp.pad(cdf_rows, ((0, 0), (1, 0)))

        # Same tensor the torch module stores as `self.cdf`, in (B, C, N-1) layout.
        self.cdf = cdf_rows.reshape(B, C, N - 1)

    def __call__(self, data: jax.Array) -> jax.Array:
        B, C, N = data.shape
        assert (B, C, N) == self._shape, (data.shape, self._shape)
        rows = data.reshape(self._rows, N)           # no pad / no astype on the hot path
        if self._use_dense:
            per_row = _pallas_w1_dense(rows, self._cdf_rows, self._w, eps=self.eps,
                                       tile=self._tile, vmem_limit=self._vmem_limit)
        else:
            denom = _pallas_denominators(rows, tile=self._tile, tk=self._tk,
                                         n=N, vmem_limit=self._vmem_limit)
            per_row = _pallas_w1_blocked(rows, self._refpad, denom, self._prefix,
                                         eps=self.eps, tile=self._tile, tk=self._tk,
                                         vmem_limit=self._vmem_limit)
        # per_row: (B*C, 1) mean over N-1 -> per-batch loss, shape (B,)
        return per_row[:, 0].reshape(B, C).mean(axis=1)


def _reference_forward(data, ref_data, eps=EPS):
    # Pure-JAX reference mirroring the PyTorch module.
    def cdf(d):
        pdf = jnp.abs(d.astype(jnp.float32))
        v = jnp.cumsum(0.5 * (pdf[..., :-1] + pdf[..., 1:]), axis=-1)
        return v / (eps + v[..., -1:])
    diff = cdf(data) - cdf(ref_data)
    res = jnp.mean(diff ** 2, axis=-1)
    return res.reshape(res.shape[0], -1).mean(axis=1)


if __name__ == "__main__":
    key = jax.random.PRNGKey(0)
    k1, k2, k3, k4 = jax.random.split(key, 4)

    # Small config -> dense (cumsum-as-matmul) path.
    B, C, N = 2, 4, 16
    ref_data = jax.random.normal(k1, (B, C, N), dtype=jnp.float32)
    data = jax.random.normal(k2, (B, C, N), dtype=jnp.float32)
    loss_dense = EasyW1Loss(ref_data)
    out_dense = jax.block_until_ready(loss_dense(data))
    exp_dense = _reference_forward(data, ref_data)
    assert out_dense.shape == (B,), out_dense.shape
    assert jnp.allclose(out_dense, exp_dense, rtol=1e-5, atol=1e-6), (out_dense, exp_dense)

    # Larger-N config forced through the blocked running-cumsum path
    # (ragged rows and a ragged last column chunk exercise the masking).
    B2, C2, N2 = 2, 5, 320
    ref2 = jax.random.normal(k3, (B2, C2, N2), dtype=jnp.float32)
    data2 = jax.random.normal(k4, (B2, C2, N2), dtype=jnp.float32)
    loss_blocked = EasyW1Loss(ref2, dense_threshold=0, col_tile=128)
    out_blocked = jax.block_until_ready(loss_blocked(data2))
    exp_blocked = _reference_forward(data2, ref2)
    assert out_blocked.shape == (B2,), out_blocked.shape
    # Slightly looser rtol: chunked prefix/reduction order differs from jnp.cumsum.
    assert jnp.allclose(out_blocked, exp_blocked, rtol=1e-4, atol=1e-6), (out_blocked, exp_blocked)

    print("KERNEL_OK")
</pallas_src>

<mosaic_0001>
module attributes {stable_mosaic.version = 11 : i64} {
  func.func @_cdf_dense_kernel(%arg0: i32, %arg1: memref<8x16xf32, #tpu.memory_space<vmem>>, %arg2: memref<16x15xf32, #tpu.memory_space<vmem>>, %arg3: memref<8x15xf32, #tpu.memory_space<vmem>>) attributes {dimension_semantics = [#tpu.dimension_semantics<parallel>], iteration_bounds = array<i64: 1>, scalar_prefetch = 0 : i64, scratch_operands = 0 : i64, tpu.core_type = #tpu.core_type<tc>, window_params = [{transform_indices = @transform_0, window_bounds = array<i64: 8, 16>}, {pipeline_mode = #tpu.pipeline_mode<synchronous>, transform_indices = @transform_1, window_bounds = array<i64: 16, 15>}, {transform_indices = @transform_2, window_bounds = array<i64: 8, 15>}]} {
    %c0 = arith.constant 0 : index
    %c0_0 = arith.constant 0 : index
    %0 = vector.load %arg1[%c0, %c0_0] : memref<8x16xf32, #tpu.memory_space<vmem>>, vector<8x16xf32>
    %1 = math.absf %0 : vector<8x16xf32>
    %c0_1 = arith.constant 0 : index
    %c0_2 = arith.constant 0 : index
    %2 = vector.load %arg2[%c0_1, %c0_2] : memref<16x15xf32, #tpu.memory_space<vmem>>, vector<16x15xf32>
    %cst = arith.constant dense<0.000000e+00> : vector<8x15xf32>
    %3 = tpu.matmul %1, %2, %cst {dimension_numbers = #tpu.dot_dimension_numbers<[1], [0], [0], [1], [0, 0, 1, 1], [], []>} : vector<8x16xf32>, vector<16x15xf32>, vector<8x15xf32> -> vector<8x15xf32>
    %cst_3 = arith.constant dense<0.000000e+00> : vector<8xf32>
    %4 = vector.multi_reduction <add>, %1, %cst_3 [1] : vector<8x16xf32> to vector<8xf32>
    %5 = vector.shape_cast %4 : vector<8xf32> to vector<8x1xf32>
    %6 = vector.extract_strided_slice %1 {offsets = [0, 0], sizes = [8, 1], strides = [1, 1]} : vector<8x16xf32> to vector<8x1xf32>
    %7 = vector.extract_strided_slice %1 {offsets = [0, 15], sizes = [8, 1], strides = [1, 1]} : vector<8x16xf32> to vector<8x1xf32>
    %8 = arith.addf %6, %7 : vector<8x1xf32>
    %cst_4 = arith.constant 5.000000e-01 : f32
    %9 = vector.broadcast %cst_4 : f32 to vector<8x1xf32>
    %10 = arith.mulf %9, %8 : vector<8x1xf32>
    %11 = arith.subf %5, %10 : vector<8x1xf32>
    %cst_5 = arith.constant 9.99999993E-9 : f32
    %12 = vector.broadcast %cst_5 : f32 to vector<8x1xf32>
    %13 = arith.addf %12, %11 : vector<8x1xf32>
    %14 = tpu.reciprocal %13 : vector<8x1xf32> -> vector<8x1xf32>
    %15 = vector.broadcast %14 : vector<8x1xf32> to vector<8x15xf32>
    %16 = arith.mulf %3, %15 : vector<8x15xf32>
    %c0_6 = arith.constant 0 : index
    %c0_7 = arith.constant 0 : index
    %17 = vector.load %arg3[%c0_6, %c0_7] : memref<8x15xf32, #tpu.memory_space<vmem>>, vector<8x15xf32>
    tpu.vector_store %arg3[%c0_6, %c0_7], %16 {strides = array<i32>} : memref<8x15xf32, #tpu.memory_space<vmem>>, vector<8x15xf32>,
    return
  }
  func.func @transform_0(%arg0: i32) -> (i32, i32) {
    %c0_i32 = arith.constant 0 : i32
    %c0_i32_0 = arith.constant 0 : i32
    return %arg0, %c0_i32 : i32, i32
  }
  func.func @transform_1(%arg0: i32) -> (i32, i32) {
    %c0_i32 = arith.constant 0 : i32
    %c0_i32_0 = arith.constant 0 : i32
    %c0_i32_1 = arith.constant 0 : i32
    return %c0_i32, %c0_i32_0 : i32, i32
  }
  func.func @transform_2(%arg0: i32) -> (i32, i32) {
    %c0_i32 = arith.constant 0 : i32
    %c0_i32_0 = arith.constant 0 : i32
    return %arg0, %c0_i32 : i32, i32
  }
}

</mosaic_0001>

<llo_original>
// kernel: tpu_custom_call.1
$region0: #{tpu_custom_call.1}
  #allocation0 [shape = 'u32[]', space=smem, size = 0x4, offset = 0x4, fixed_abs, tag = 'smem constant byte address 0x4 - core index']
  #allocation1 [shape = 'u32[144,128]{1,0:T(1,128)}', space=vmem, size = 0x12000, scoped, tag = 'internal scratch']
  %s0 = inlined_call_operand.hbm [shape: f32[8,16], index: 0, kind: input, shape index: {}]
  %s1 = inlined_call_operand.hbm [shape: f32[16,15], index: 1, kind: input, shape index: {}]
  %s2 = inlined_call_operand.hbm [shape: f32[8,15], index: 2, kind: output, shape index: {}]
  %s3 = sld [smem:[#allocation0]]
  $region26: #{tpu_custom_call.1} parent=0
    _
  %s5 = ssub.s32 1, %s3
  %s6 = scalar_select 0, %s5, %s3
  $region1: #{tpu_custom_call.1} parent=0
    #allocation2 [shape = 'u8[4096]{0}', space=vmem, size = 0x1000, scoped, tag = 'input window, operand 0, single buffered']
    #allocation3 [shape = 's32[1]{0}', space=sflag, size = 0x4, scoped, tag = 'scoped memory for tpu_custom_call.1']
    #allocation4 [shape = 's32[1]{0}', space=sflag, size = 0x4, scoped, tag = 'scoped memory for tpu_custom_call.1']
    #allocation5 [shape = 'u8[8192]{0}', space=vmem, size = 0x2000, scoped, tag = 'input window, operand 1, single buffered']
    #allocation6 [shape = 's32[1]{0}', space=sflag, size = 0x4, scoped, tag = 'scoped memory for tpu_custom_call.1']
    #allocation7 [shape = 'u8[4096]{0}', space=vmem, size = 0x1000, scoped, tag = 'output window, operand 0, single buffered']
    %7 = vsyncpa [#allocation3], 0
    %8 = vsyncpa [#allocation6], 0
    %9 = vsyncpa [#allocation4], 0
    // Predicated region
    $region2: #{tpu_custom_call.1} parent=1 // pred_check
      _
    $region3: #{tpu_custom_call.1} parent=1 // pred_check_branch
      %11 = sbr.rel (0) target = $region5
    $region4: #{tpu_custom_call.1} parent=1 // pred_region
      %s13 = ssub.s32 128, 128
      %14 = vsyncadd [#allocation3], %s13
      %s16 = sshll.u32 [#allocation2], 4
      %s17 = int_to_ptr.vmem [resolvable:$true] %s16
      %19 = dma.hbm_to_vmem [thread:$0]  %s0, 128, %s17, [#allocation3]
    $region5: #{tpu_custom_call.1} parent=1 // pred_fallthru
      _
    // Predicated region
    $region6: #{tpu_custom_call.1} parent=1 // pred_check
      _
    $region7: #{tpu_custom_call.1} parent=1 // pred_check_branch
      %21 = sbr.rel (0) target = $region9
    $region8: #{tpu_custom_call.1} parent=1 // pred_region
      %s23 = ssub.s32 256, 256
      %24 = vsyncadd [#allocation6], %s23
      %s25 = sshll.u32 [#allocation5], 4
      %s26 = int_to_ptr.vmem [resolvable:$true] %s25
      %31 = dma.hbm_to_vmem [thread:$0]  %s1, 256, %s26, [#allocation6], 128, 128, 8
    $region9: #{tpu_custom_call.1} parent=1 // pred_fallthru
      _
    // Predicated region
    $region10: #{tpu_custom_call.1} parent=1 // pred_check
      _
    $region11: #{tpu_custom_call.1} parent=1 // pred_check_branch
      %33 = sbr.rel (0) target = $region13
    $region12: #{tpu_custom_call.1} parent=1 // pred_region
      %34 = dma.done [#allocation3], 128
    $region13: #{tpu_custom_call.1} parent=1 // pred_fallthru
      _
    // Predicated region
    $region14: #{tpu_custom_call.1} parent=1 // pred_check
      _
    $region15: #{tpu_custom_call.1} parent=1 // pred_check_branch
      %36 = sbr.rel (0) target = $region17
    $region16: #{tpu_custom_call.1} parent=1 // pred_region
      %37 = dma.done [#allocation6], 256
    $region17: #{tpu_custom_call.1} parent=1 // pred_fallthru
      _
    %v38 = vld [vmem:[#allocation2] sm:$0xff]
    %v39 = vand.u32 2147483647, %v38
    %v40 = vld [vmem:[#allocation5] sm:$0xff]
    %v41 = vld [vmem:[#allocation5 + $0x8] sm:$0xff]
    %vm42 = vcmask 130048
    %v44 = vsel %vm42, %v39, 0
    %46 = vmatprep.subr.mxu0 0.0
    %47 = vmatpush1.msra.mxu0 0.0
    %48 = vmatprep.subr.mxu0 0.0
    %49 = vmatpush1.msra.mxu0 0.0
    %50 = vmatprep.subr.mxu0 0.0
    %51 = vmatpush1.msra.mxu0 0.0
    %52 = vmatprep.subr.mxu0 0.0
    %53 = vmatpush1.msra.mxu0 0.0
    %54 = vmatprep.subr.mxu0 0.0
    %55 = vmatpush1.msra.mxu0 0.0
    %56 = vmatprep.subr.mxu0 0.0
    %57 = vmatpush1.msra.mxu0 0.0
    %58 = vmatprep.subr.mxu0 0.0
    %59 = vmatpush1.msra.mxu0 0.0
    %60 = vmatprep.subr.mxu0 0.0
    %61 = vmatpush1.msra.mxu0 0.0
    %62 = vmatprep.subr.mxu0 0.0
    %63 = vmatpush1.msra.mxu0 0.0
    %64 = vmatprep.subr.mxu0 0.0
    %65 = vmatpush1.msra.mxu0 0.0
    %66 = vmatprep.subr.mxu0 0.0
    %67 = vmatpush1.msra.mxu0 0.0
    %68 = vmatprep.subr.mxu0 0.0
    %69 = vmatpush1.msra.mxu0 0.0
    %70 = vmatprep.subr.mxu0 0.0
    %71 = vmatpush1.msra.mxu0 0.0
    %72 = vmatprep.subr.mxu0 0.0
    %73 = vmatpush1.msra.mxu0 0.0
    %74 = vmatprep.subr.mxu0 0.0
    %75 = vmatpush1.msra.mxu0 %v41
    %76 = vmatprep.subr.mxu0 0.0
    %77 = vmatpush1.msra.mxu0 %v40
    %78 = vmatprep.subr.mxu0 0.0
    %79 = vmatpush2.msra.mxu0 0.0
    %80 = vmatprep.subr.mxu0 0.0
    %81 = vmatpush2.msra.mxu0 0.0
    %82 = vmatprep.subr.mxu0 0.0
    %83 = vmatpush2.msra.mxu0 0.0
    %84 = vmatprep.subr.mxu0 0.0
    %85 = vmatpush2.msra.mxu0 0.0
    %86 = vmatprep.subr.mxu0 0.0
    %87 = vmatpush2.msra.mxu0 0.0
    %88 = vmatprep.subr.mxu0 0.0
    %89 = vmatpush2.msra.mxu0 0.0
    %90 = vmatprep.subr.mxu0 0.0
    %91 = vmatpush2.msra.mxu0 0.0
    %92 = vmatprep.subr.mxu0 0.0
    %93 = vmatpush2.msra.mxu0 0.0
    %94 = vmatprep.subr.mxu0 0.0
    %95 = vmatpush2.msra.mxu0 0.0
    %96 = vmatprep.subr.mxu0 0.0
    %97 = vmatpush2.msra.mxu0 0.0
    %98 = vmatprep.subr.mxu0 0.0
    %99 = vmatpush2.msra.mxu0 0.0
    %100 = vmatprep.subr.mxu0 0.0
    %101 = vmatpush2.msra.mxu0 0.0
    %102 = vmatprep.subr.mxu0 0.0
    %103 = vmatpush2.msra.mxu0 0.0
    %104 = vmatprep.subr.mxu0 0.0
    %105 = vmatpush2.msra.mxu0 0.0
    %106 = vmatprep.subr.mxu0 0.0
    %107 = vmatpush2.msra.mxu0 0.0
    %108 = vmatprep.subr.mxu0 0.0
    %109 = vmatpush2.msra.mxu0 0.0
    %110 = vmatprep.mubr.f32.mxu0 0.0
    %111 = vmatmul.mubr.f32.gmra.mxu0 %v44
    %v112 = vpop.f32.mrf.mxu0
    %v113 = vadd.f32 0.0, %v112
    %v114 = vpop.f32.mrf.mxu0
    %115 = vdwg.mxu0
    %v116 = vsel %vm42, %v39, 0.0
    %117 = vadd.xlane.f32.xlu0 %v116
    %v118 = vpop.xlane.xlu0 %117
    %119 = vrot.lane.b32.xlu0 %v39, 113
    %v120 = vpop.permute.xlu0 %119
    %v122 = vadd.f32 %v39, %v120
    %v123 = vmul.f32 %v122, 0.5
    %v124 = vsub.f32 %v118, %v123
    %v125 = vadd.f32 %v124, 1e-08
    %v126 = vrcp.pop %v125
    %128 = vset.pattern.permute.xlu0 0
    %129 = vperm.xlu0 %128, %v126
    %v130 = vpop.permute.xlu0 %129
    %v132 = vmul.f32 %v113, %v130
    %vm133 = vcmask 121856
    %134 = vst.msk [vmem:[#allocation7] sm:$0xff] %vm133, %v132
    // Predicated region
    $region18: #{tpu_custom_call.1} parent=1 // pred_check
      _
    $region19: #{tpu_custom_call.1} parent=1 // pred_check_branch
      %136 = sbr.rel (0) target = $region21
    $region20: #{tpu_custom_call.1} parent=1 // pred_region
      %s138 = ssub.s32 128, 128
      %139 = vsyncadd [#allocation4], %s138
      %s141 = sshll.u32 [#allocation7], 4
      %s142 = int_to_ptr.vmem [resolvable:$true] %s141
      %144 = dma.vmem_to_hbm [thread:$0]  %s142, 128, %s2, [#allocation4]
    $region21: #{tpu_custom_call.1} parent=1 // pred_fallthru
      _
    // Predicated region
    $region22: #{tpu_custom_call.1} parent=1 // pred_check
      _
    $region23: #{tpu_custom_call.1} parent=1 // pred_check_branch
      %146 = sbr.rel (0) target = $region25
    $region24: #{tpu_custom_call.1} parent=1 // pred_region
      %147 = dma.done [#allocation4], 128
    $region25: #{tpu_custom_call.1} parent=1 // pred_fallthru
      _
    %148 = vsyncpa [#allocation3], 1
    %149 = vsyncpa [#allocation6], 1
    %150 = vsyncpa [#allocation4], 1

</llo_original>
